<compile_context>
chip_gen: v7x
topology: tpu7x:2x2x1
jax: 0.10.0
libtpu: 0.0.40
codegen_flags: <defaults>
</compile_context>

<pallas_src>
import functools

import jax
import jax.numpy as jnp
from jax.experimental import pallas as pl
from jax.experimental.pallas import tpu as pltpu


def _round_up(n, m):
    return ((n + m - 1) // m) * m


def _autoencoder_kernel(x_ref, w_ref, b_ref, recon_ref, feat_ref):
    """One batch tile through the whole autoencoder.

    x_ref     : (TB, D)     zero-padded input activations
    w_ref     : (6, D, D)   all six weight matrices, zero-padded, VMEM-resident
    b_ref     : (6, 1, D)   all six bias rows, zero-padded, VMEM-resident
    recon_ref : (TB, D)     reconstruction (valid lanes [0, input_dim))
    feat_ref  : (TB, D)     latent features (valid lanes [0, latent))
    """
    b = b_ref[...]  # (6, 1, D): tiny, load once
    h = x_ref[...]

    # ----- encoder -----
    h = jnp.maximum(
        jnp.dot(h, w_ref[0], preferred_element_type=jnp.float32) + b[0], 0.0)
    h = jnp.maximum(
        jnp.dot(h, w_ref[1], preferred_element_type=jnp.float32) + b[1], 0.0)
    z = jnp.tanh(
        jnp.dot(h, w_ref[2], preferred_element_type=jnp.float32) + b[2])
    feat_ref[...] = z.astype(feat_ref.dtype)

    # ----- decoder -----
    d = jnp.maximum(
        jnp.dot(z, w_ref[3], preferred_element_type=jnp.float32) + b[3], 0.0)
    d = jnp.maximum(
        jnp.dot(d, w_ref[4], preferred_element_type=jnp.float32) + b[4], 0.0)
    r = jnp.dot(d, w_ref[5], preferred_element_type=jnp.float32) + b[5]
    recon_ref[...] = r.astype(recon_ref.dtype)


def _pack_params(params, dpad):
    """Zero-pad every (in,out) weight to (dpad,dpad) and every bias to (1,dpad)."""
    ws, bs = [], []
    for i in range(6):
        w = params[2 * i].astype(jnp.float32)
        bias = jnp.reshape(params[2 * i + 1], (-1,)).astype(jnp.float32)
        fi, fo = w.shape
        ws.append(jnp.zeros((dpad, dpad), jnp.float32).at[:fi, :fo].set(w))
        bs.append(jnp.zeros((1, dpad), jnp.float32).at[0, :fo].set(bias))
    return jnp.stack(ws, axis=0), jnp.stack(bs, axis=0)  # (6,D,D), (6,1,D)


@functools.partial(jax.jit, static_argnames=("block_batch",))
def autoencoder_forward(x, params, block_batch=256):
    """Full autoencoder forward pass as a single batch-gridded Pallas call.

    x:       (batch, input_dim) float32
    params:  flat tuple (w1, b1, ..., w6, b6); weights stored as (in, out)
    returns: (reconstruction (batch, input_dim), features (batch, latent))
    """
    batch, input_dim = x.shape
    latent = params[4].shape[1]  # w3: (hidden//2, latent)

    # One common lane-dense padded width covering every layer dimension.
    all_dims = [d for i in range(6) for d in params[2 * i].shape]
    dpad = _round_up(max(all_dims + [128]), 128)

    # Batch tile: multiple of 8 (f32 sublane), capped so VMEM stays comfortably
    # under the 32 MiB scoped default even on v7x.
    tb = min(block_batch, _round_up(batch, 8))
    batch_pad = _round_up(batch, tb)
    grid = (batch_pad // tb,)

    w_all, b_all = _pack_params(params, dpad)
    x_pad = jnp.zeros((batch_pad, dpad), jnp.float32).at[:batch, :input_dim].set(
        x.astype(jnp.float32))

    out_shapes = (
        jax.ShapeDtypeStruct((batch_pad, dpad), jnp.float32),  # recon (padded)
        jax.ShapeDtypeStruct((batch_pad, dpad), jnp.float32),  # features (padded)
    )

    recon_pad, feat_pad = pl.pallas_call(
        _autoencoder_kernel,
        out_shape=out_shapes,
        grid=grid,
        in_specs=[
            pl.BlockSpec((tb, dpad), lambda i: (i, 0)),          # x: blocked over batch
            pl.BlockSpec((6, dpad, dpad), lambda i: (0, 0, 0)),  # weights: VMEM-resident
            pl.BlockSpec((6, 1, dpad), lambda i: (0, 0, 0)),     # biases: VMEM-resident
        ],
        out_specs=(
            pl.BlockSpec((tb, dpad), lambda i: (i, 0)),
            pl.BlockSpec((tb, dpad), lambda i: (i, 0)),
        ),
        compiler_params=pltpu.CompilerParams(
            dimension_semantics=("parallel",),  # shard batch tiles across TCs on v7x
        ),
    )(x_pad, w_all, b_all)

    return recon_pad[:batch, :input_dim], feat_pad[:batch, :latent]


# ---------------------------------------------------------------------------
# Parameter init (mirrors the PyTorch module) and plain-JAX reference.
# ---------------------------------------------------------------------------

def _xavier_uniform(key, fan_in, fan_out):
    bound = jnp.sqrt(6.0 / (fan_in + fan_out))
    # Stored as (in, out) so kernel computes x @ W.
    return jax.random.uniform(key, (fan_in, fan_out), jnp.float32, -bound, bound)


def _linear_bias(key, fan_in, fan_out):
    # PyTorch nn.Linear default bias init: U(-1/sqrt(fan_in), 1/sqrt(fan_in)).
    bound = 1.0 / jnp.sqrt(jnp.float32(fan_in))
    return jax.random.uniform(key, (fan_out,), jnp.float32, -bound, bound)


def init_params(key, input_dim, hidden_count=128, latent_size=8):
    dims = [
        (input_dim, hidden_count),          # encoder L1
        (hidden_count, hidden_count // 2),  # encoder L2
        (hidden_count // 2, latent_size),   # encoder L3
        (latent_size, hidden_count // 2),   # decoder L1
        (hidden_count // 2, hidden_count),  # decoder L2
        (hidden_count, input_dim),          # decoder L3
    ]
    params = []
    keys = jax.random.split(key, 2 * len(dims))
    for i, (fi, fo) in enumerate(dims):
        params.append(_xavier_uniform(keys[2 * i], fi, fo))
        params.append(_linear_bias(keys[2 * i + 1], fi, fo))
    return tuple(params)


def reference_forward(x, params):
    """Plain-JAX reference for correctness checking."""
    w1, b1, w2, b2, w3, b3, w4, b4, w5, b5, w6, b6 = params
    h = jnp.maximum(x @ w1 + b1, 0.0)
    h = jnp.maximum(h @ w2 + b2, 0.0)
    z = jnp.tanh(h @ w3 + b3)
    d = jnp.maximum(z @ w4 + b4, 0.0)
    d = jnp.maximum(d @ w5 + b5, 0.0)
    r = d @ w6 + b6
    return r, z


if __name__ == "__main__":
    key = jax.random.PRNGKey(0)
    k_x, k_p, k_x2 = jax.random.split(key, 3)

    input_dim = 16      # input_shape[0]
    hidden_count = 128
    latent_size = 8
    params = init_params(k_p, input_dim, hidden_count, latent_size)

    # Small single-tile case (grid of 1).
    x_small = jax.random.normal(k_x, (8, input_dim), jnp.float32)
    recon, feats = jax.block_until_ready(autoencoder_forward(x_small, params))
    ref_recon, ref_feats = reference_forward(x_small, params)
    assert recon.shape == (8, input_dim) and feats.shape == (8, latent_size)
    assert jnp.allclose(recon, ref_recon, atol=1e-4, rtol=1e-4)
    assert jnp.allclose(feats, ref_feats, atol=1e-4, rtol=1e-4)

    # Multi-tile case exercising the batch grid + batch padding (40 -> 3 tiles of 16).
    x_big = jax.random.normal(k_x2, (40, input_dim), jnp.float32)
    recon_b, feats_b = jax.block_until_ready(
        autoencoder_forward(x_big, params, block_batch=16))
    ref_recon_b, ref_feats_b = reference_forward(x_big, params)
    assert recon_b.shape == (40, input_dim) and feats_b.shape == (40, latent_size)
    assert jnp.allclose(recon_b, ref_recon_b, atol=1e-4, rtol=1e-4)
    assert jnp.allclose(feats_b, ref_feats_b, atol=1e-4, rtol=1e-4)

    print("KERNEL_OK")
</pallas_src>

<mosaic_0001>
module attributes {stable_mosaic.version = 11 : i64} {
  func.func @_autoencoder_kernel(%arg0: i32, %arg1: memref<8x128xf32, #tpu.memory_space<vmem>>, %arg2: memref<6x128x128xf32, #tpu.memory_space<vmem>>, %arg3: memref<6x1x128xf32, #tpu.memory_space<vmem>>, %arg4: memref<8x128xf32, #tpu.memory_space<vmem>>, %arg5: memref<8x128xf32, #tpu.memory_space<vmem>>) attributes {dimension_semantics = [#tpu.dimension_semantics<parallel>], iteration_bounds = array<i64: 1>, scalar_prefetch = 0 : i64, scratch_operands = 0 : i64, tpu.core_type = #tpu.core_type<tc>, window_params = [{transform_indices = @transform_0, window_bounds = array<i64: 8, 128>}, {pipeline_mode = #tpu.pipeline_mode<synchronous>, transform_indices = @transform_1, window_bounds = array<i64: 6, 128, 128>}, {pipeline_mode = #tpu.pipeline_mode<synchronous>, transform_indices = @transform_2, window_bounds = array<i64: 6, 1, 128>}, {transform_indices = @transform_3, window_bounds = array<i64: 8, 128>}, {transform_indices = @transform_4, window_bounds = array<i64: 8, 128>}]} {
    %c0 = arith.constant 0 : index
    %c0_0 = arith.constant 0 : index
    %c0_1 = arith.constant 0 : index
    %0 = vector.load %arg3[%c0, %c0_0, %c0_1] : memref<6x1x128xf32, #tpu.memory_space<vmem>>, vector<6x1x128xf32>
    %c0_2 = arith.constant 0 : index
    %c0_3 = arith.constant 0 : index
    %1 = vector.load %arg1[%c0_2, %c0_3] : memref<8x128xf32, #tpu.memory_space<vmem>>, vector<8x128xf32>
    %c0_4 = arith.constant 0 : index
    %c0_5 = arith.constant 0 : index
    %c0_6 = arith.constant 0 : index
    %2 = vector.load %arg2[%c0_4, %c0_5, %c0_6] : memref<6x128x128xf32, #tpu.memory_space<vmem>>, vector<1x128x128xf32>
    %3 = vector.shape_cast %2 : vector<1x128x128xf32> to vector<128x128xf32>
    %cst = arith.constant dense<0.000000e+00> : vector<8x128xf32>
    %4 = tpu.matmul %1, %3, %cst {dimension_numbers = #tpu.dot_dimension_numbers<[1], [0], [0], [1], [0, 0, 1, 1], [], []>} : vector<8x128xf32>, vector<128x128xf32>, vector<8x128xf32> -> vector<8x128xf32>
    %5 = vector.extract_strided_slice %0 {offsets = [0, 0, 0], sizes = [1, 1, 128], strides = [1, 1, 1]} : vector<6x1x128xf32> to vector<1x1x128xf32>
    %6 = vector.shape_cast %5 : vector<1x1x128xf32> to vector<1x128xf32>
    %7 = vector.broadcast %6 : vector<1x128xf32> to vector<8x128xf32>
    %8 = arith.addf %4, %7 : vector<8x128xf32>
    %cst_7 = arith.constant 0.000000e+00 : f32
    %9 = vector.broadcast %cst_7 : f32 to vector<8x128xf32>
    %10 = arith.maximumf %8, %9 : vector<8x128xf32>
    %c1 = arith.constant 1 : index
    %c0_8 = arith.constant 0 : index
    %c0_9 = arith.constant 0 : index
    %11 = vector.load %arg2[%c1, %c0_8, %c0_9] : memref<6x128x128xf32, #tpu.memory_space<vmem>>, vector<1x128x128xf32>
    %12 = vector.shape_cast %11 : vector<1x128x128xf32> to vector<128x128xf32>
    %cst_10 = arith.constant dense<0.000000e+00> : vector<8x128xf32>
    %13 = tpu.matmul %10, %12, %cst_10 {dimension_numbers = #tpu.dot_dimension_numbers<[1], [0], [0], [1], [0, 0, 1, 1], [], []>} : vector<8x128xf32>, vector<128x128xf32>, vector<8x128xf32> -> vector<8x128xf32>
    %14 = vector.extract_strided_slice %0 {offsets = [1, 0, 0], sizes = [1, 1, 128], strides = [1, 1, 1]} : vector<6x1x128xf32> to vector<1x1x128xf32>
    %15 = vector.shape_cast %14 : vector<1x1x128xf32> to vector<1x128xf32>
    %16 = vector.broadcast %15 : vector<1x128xf32> to vector<8x128xf32>
    %17 = arith.addf %13, %16 : vector<8x128xf32>
    %cst_11 = arith.constant 0.000000e+00 : f32
    %18 = vector.broadcast %cst_11 : f32 to vector<8x128xf32>
    %19 = arith.maximumf %17, %18 : vector<8x128xf32>
    %c2 = arith.constant 2 : index
    %c0_12 = arith.constant 0 : index
    %c0_13 = arith.constant 0 : index
    %20 = vector.load %arg2[%c2, %c0_12, %c0_13] : memref<6x128x128xf32, #tpu.memory_space<vmem>>, vector<1x128x128xf32>
    %21 = vector.shape_cast %20 : vector<1x128x128xf32> to vector<128x128xf32>
    %cst_14 = arith.constant dense<0.000000e+00> : vector<8x128xf32>
    %22 = tpu.matmul %19, %21, %cst_14 {dimension_numbers = #tpu.dot_dimension_numbers<[1], [0], [0], [1], [0, 0, 1, 1], [], []>} : vector<8x128xf32>, vector<128x128xf32>, vector<8x128xf32> -> vector<8x128xf32>
    %23 = vector.extract_strided_slice %0 {offsets = [2, 0, 0], sizes = [1, 1, 128], strides = [1, 1, 1]} : vector<6x1x128xf32> to vector<1x1x128xf32>
    %24 = vector.shape_cast %23 : vector<1x1x128xf32> to vector<1x128xf32>
    %25 = vector.broadcast %24 : vector<1x128xf32> to vector<8x128xf32>
    %26 = arith.addf %22, %25 : vector<8x128xf32>
    %27 = math.tanh %26 : vector<8x128xf32>
    %c0_15 = arith.constant 0 : index
    %c0_16 = arith.constant 0 : index
    %28 = vector.load %arg5[%c0_15, %c0_16] : memref<8x128xf32, #tpu.memory_space<vmem>>, vector<8x128xf32>
    tpu.vector_store %arg5[%c0_15, %c0_16], %27 {strides = array<i32>} : memref<8x128xf32, #tpu.memory_space<vmem>>, vector<8x128xf32>,
    %c3 = arith.constant 3 : index
    %c0_17 = arith.constant 0 : index
    %c0_18 = arith.constant 0 : index
    %29 = vector.load %arg2[%c3, %c0_17, %c0_18] : memref<6x128x128xf32, #tpu.memory_space<vmem>>, vector<1x128x128xf32>
    %30 = vector.shape_cast %29 : vector<1x128x128xf32> to vector<128x128xf32>
    %cst_19 = arith.constant dense<0.000000e+00> : vector<8x128xf32>
    %31 = tpu.matmul %27, %30, %cst_19 {dimension_numbers = #tpu.dot_dimension_numbers<[1], [0], [0], [1], [0, 0, 1, 1], [], []>} : vector<8x128xf32>, vector<128x128xf32>, vector<8x128xf32> -> vector<8x128xf32>
    %32 = vector.extract_strided_slice %0 {offsets = [3, 0, 0], sizes = [1, 1, 128], strides = [1, 1, 1]} : vector<6x1x128xf32> to vector<1x1x128xf32>
    %33 = vector.shape_cast %32 : vector<1x1x128xf32> to vector<1x128xf32>
    %34 = vector.broadcast %33 : vector<1x128xf32> to vector<8x128xf32>
    %35 = arith.addf %31, %34 : vector<8x128xf32>
    %cst_20 = arith.constant 0.000000e+00 : f32
    %36 = vector.broadcast %cst_20 : f32 to vector<8x128xf32>
    %37 = arith.maximumf %35, %36 : vector<8x128xf32>
    %c4 = arith.constant 4 : index
    %c0_21 = arith.constant 0 : index
    %c0_22 = arith.constant 0 : index
    %38 = vector.load %arg2[%c4, %c0_21, %c0_22] : memref<6x128x128xf32, #tpu.memory_space<vmem>>, vector<1x128x128xf32>
    %39 = vector.shape_cast %38 : vector<1x128x128xf32> to vector<128x128xf32>
    %cst_23 = arith.constant dense<0.000000e+00> : vector<8x128xf32>
    %40 = tpu.matmul %37, %39, %cst_23 {dimension_numbers = #tpu.dot_dimension_numbers<[1], [0], [0], [1], [0, 0, 1, 1], [], []>} : vector<8x128xf32>, vector<128x128xf32>, vector<8x128xf32> -> vector<8x128xf32>
    %41 = vector.extract_strided_slice %0 {offsets = [4, 0, 0], sizes = [1, 1, 128], strides = [1, 1, 1]} : vector<6x1x128xf32> to vector<1x1x128xf32>
    %42 = vector.shape_cast %41 : vector<1x1x128xf32> to vector<1x128xf32>
    %43 = vector.broadcast %42 : vector<1x128xf32> to vector<8x128xf32>
    %44 = arith.addf %40, %43 : vector<8x128xf32>
    %cst_24 = arith.constant 0.000000e+00 : f32
    %45 = vector.broadcast %cst_24 : f32 to vector<8x128xf32>
    %46 = arith.maximumf %44, %45 : vector<8x128xf32>
    %c5 = arith.constant 5 : index
    %c0_25 = arith.constant 0 : index
    %c0_26 = arith.constant 0 : index
    %47 = vector.load %arg2[%c5, %c0_25, %c0_26] : memref<6x128x128xf32, #tpu.memory_space<vmem>>, vector<1x128x128xf32>
    %48 = vector.shape_cast %47 : vector<1x128x128xf32> to vector<128x128xf32>
    %cst_27 = arith.constant dense<0.000000e+00> : vector<8x128xf32>
    %49 = tpu.matmul %46, %48, %cst_27 {dimension_numbers = #tpu.dot_dimension_numbers<[1], [0], [0], [1], [0, 0, 1, 1], [], []>} : vector<8x128xf32>, vector<128x128xf32>, vector<8x128xf32> -> vector<8x128xf32>
    %50 = vector.extract_strided_slice %0 {offsets = [5, 0, 0], sizes = [1, 1, 128], strides = [1, 1, 1]} : vector<6x1x128xf32> to vector<1x1x128xf32>
    %51 = vector.shape_cast %50 : vector<1x1x128xf32> to vector<1x128xf32>
    %52 = vector.broadcast %51 : vector<1x128xf32> to vector<8x128xf32>
    %53 = arith.addf %49, %52 : vector<8x128xf32>
    %c0_28 = arith.constant 0 : index
    %c0_29 = arith.constant 0 : index
    %54 = vector.load %arg4[%c0_28, %c0_29] : memref<8x128xf32, #tpu.memory_space<vmem>>, vector<8x128xf32>
    tpu.vector_store %arg4[%c0_28, %c0_29], %53 {strides = array<i32>} : memref<8x128xf32, #tpu.memory_space<vmem>>, vector<8x128xf32>,
    return
  }
  func.func @transform_0(%arg0: i32) -> (i32, i32) {
    %c0_i32 = arith.constant 0 : i32
    %c0_i32_0 = arith.constant 0 : i32
    return %arg0, %c0_i32 : i32, i32
  }
  func.func @transform_1(%arg0: i32) -> (i32, i32, i32) {
    %c0_i32 = arith.constant 0 : i32
    %c0_i32_0 = arith.constant 0 : i32
    %c0_i32_1 = arith.constant 0 : i32
    %c0_i32_2 = arith.constant 0 : i32
    return %c0_i32, %c0_i32_0, %c0_i32_1 : i32, i32, i32
  }
  func.func @transform_2(%arg0: i32) -> (i32, i32, i32) {
    %c0_i32 = arith.constant 0 : i32
    %c0_i32_0 = arith.constant 0 : i32
    %c0_i32_1 = arith.constant 0 : i32
    %c0_i32_2 = arith.constant 0 : i32
    return %c0_i32, %c0_i32_0, %c0_i32_1 : i32, i32, i32
  }
  func.func @transform_3(%arg0: i32) -> (i32, i32) {
    %c0_i32 = arith.constant 0 : i32
    %c0_i32_0 = arith.constant 0 : i32
    return %arg0, %c0_i32 : i32, i32
  }
  func.func @transform_4(%arg0: i32) -> (i32, i32) {
    %c0_i32 = arith.constant 0 : i32
    %c0_i32_0 = arith.constant 0 : i32
    return %arg0, %c0_i32 : i32, i32
  }
}

</mosaic_0001>

<llo_original>
// kernel: autoencoder_forward.1
$region0: #{autoencoder_forward.1}
  #allocation0 [shape = 'u32[]', space=smem, size = 0x4, offset = 0x4, fixed_abs, tag = 'smem constant byte address 0x4 - core index']
  #allocation1 [shape = 'u32[144,128]{1,0:T(1,128)}', space=vmem, size = 0x12000, scoped, tag = 'internal scratch']
  %s0 = inlined_call_operand.vmem [shape: f32[8,128], index: 0, kind: input, shape index: {}]
  %s1 = inlined_call_operand.vmem [shape: f32[6,128,128], index: 1, kind: input, shape index: {}]
  %s2 = inlined_call_operand.vmem [shape: f32[6,1,128], index: 2, kind: input, shape index: {}]
  %s3 = inlined_call_operand.hbm [shape: f32[8,128], index: 3, kind: output, shape index: {0}]
  %s4 = inlined_call_operand.hbm [shape: f32[8,128], index: 4, kind: output, shape index: {1}]
  %5 = xla_tuple %s3, %s4
  %s6 = sld [smem:[#allocation0]]
  $region30: #{autoencoder_forward.1} parent=0
    _
  %s8 = ssub.s32 1, %s6
  %s9 = scalar_select 0, %s8, %s6
  $region1: #{autoencoder_forward.1} parent=0
    #allocation2 [shape = 'u8[4096]{0}', space=vmem, size = 0x1000, scoped, tag = 'output window, operand 0, single buffered']
    #allocation3 [shape = 's32[1]{0}', space=sflag, size = 0x4, scoped, tag = 'scoped memory for autoencoder_forward.1']
    #allocation4 [shape = 'u8[4096]{0}', space=vmem, size = 0x1000, scoped, tag = 'output window, operand 1, single buffered']
    #allocation5 [shape = 's32[1]{0}', space=sflag, size = 0x4, scoped, tag = 'scoped memory for autoencoder_forward.1']
    %10 = vsyncpa [#allocation3], 0
    %11 = vsyncpa [#allocation5], 0
    // Predicated region
    $region2: #{autoencoder_forward.1} parent=1 // pred_check
      _
    $region3: #{autoencoder_forward.1} parent=1 // pred_check_branch
      %13 = sbr.rel (0) target = $region5
    $region4: #{autoencoder_forward.1} parent=1 // pred_region
      _
    $region5: #{autoencoder_forward.1} parent=1 // pred_fallthru
      _
    // Predicated region
    $region6: #{autoencoder_forward.1} parent=1 // pred_check
      _
    $region7: #{autoencoder_forward.1} parent=1 // pred_check_branch
      %15 = sbr.rel (0) target = $region9
    $region8: #{autoencoder_forward.1} parent=1 // pred_region
      _
    $region9: #{autoencoder_forward.1} parent=1 // pred_fallthru
      _
    // Predicated region
    $region10: #{autoencoder_forward.1} parent=1 // pred_check
      _
    $region11: #{autoencoder_forward.1} parent=1 // pred_check_branch
      %17 = sbr.rel (0) target = $region13
    $region12: #{autoencoder_forward.1} parent=1 // pred_region
      _
    $region13: #{autoencoder_forward.1} parent=1 // pred_fallthru
      _
    %v18 = vld [vmem:[%s2] sm:$0x1]
    %v19 = vld [vmem:[%s2 + $0x1] sm:$0x1]
    %v20 = vld [vmem:[%s2 + $0x2] sm:$0x1]
    %v21 = vld [vmem:[%s2 + $0x3] sm:$0x1]
    %v22 = vld [vmem:[%s2 + $0x4] sm:$0x1]
    %v23 = vld [vmem:[%s2 + $0x5] sm:$0x1]
    %v24 = vld [vmem:[%s0] sm:$0xff]
    %v25 = vld [vmem:[%s1] sm:$0xff]
    %v26 = vld [vmem:[%s1 + $0x8] sm:$0xff]
    %v27 = vld [vmem:[%s1 + $0x10] sm:$0xff]
    %v28 = vld [vmem:[%s1 + $0x18] sm:$0xff]
    %v29 = vld [vmem:[%s1 + $0x20] sm:$0xff]
    %v30 = vld [vmem:[%s1 + $0x28] sm:$0xff]
    %v31 = vld [vmem:[%s1 + $0x30] sm:$0xff]
    %v32 = vld [vmem:[%s1 + $0x38] sm:$0xff]
    %v33 = vld [vmem:[%s1 + $0x40] sm:$0xff]
    %v34 = vld [vmem:[%s1 + $0x48] sm:$0xff]
    %v35 = vld [vmem:[%s1 + $0x50] sm:$0xff]
    %v36 = vld [vmem:[%s1 + $0x58] sm:$0xff]
    %v37 = vld [vmem:[%s1 + $0x60] sm:$0xff]
    %v38 = vld [vmem:[%s1 + $0x68] sm:$0xff]
    %v39 = vld [vmem:[%s1 + $0x70] sm:$0xff]
    %v40 = vld [vmem:[%s1 + $0x78] sm:$0xff]
    %v42 = vlaneseq
    %v43 = vshrl.u32 %v42, 7
    %v44 = vsub.s32 0, %v43
    %v45 = vrot.slane %v18, %v44
    %47 = vmatprep.subr.mxu0 0.0
    %48 = vmatpush1.msra.mxu0 %v25
    %49 = vmatprep.subr.mxu0 0.0
    %50 = vmatpush1.msra.mxu0 %v26
    %51 = vmatprep.subr.mxu0 0.0
    %52 = vmatpush1.msra.mxu0 %v27
    %53 = vmatprep.subr.mxu0 0.0
    %54 = vmatpush1.msra.mxu0 %v28
    %55 = vmatprep.subr.mxu0 0.0
    %56 = vmatpush1.msra.mxu0 %v29
    %57 = vmatprep.subr.mxu0 0.0
    %58 = vmatpush1.msra.mxu0 %v30
    %59 = vmatprep.subr.mxu0 0.0
    %60 = vmatpush1.msra.mxu0 %v31
    %61 = vmatprep.subr.mxu0 0.0
    %62 = vmatpush1.msra.mxu0 %v32
    %63 = vmatprep.subr.mxu0 0.0
    %64 = vmatpush1.msra.mxu0 %v33
    %65 = vmatprep.subr.mxu0 0.0
    %66 = vmatpush1.msra.mxu0 %v34
    %67 = vmatprep.subr.mxu0 0.0
    %68 = vmatpush1.msra.mxu0 %v35
    %69 = vmatprep.subr.mxu0 0.0
    %70 = vmatpush1.msra.mxu0 %v36
    %71 = vmatprep.subr.mxu0 0.0
    %72 = vmatpush1.msra.mxu0 %v37
    %73 = vmatprep.subr.mxu0 0.0
    %74 = vmatpush1.msra.mxu0 %v38
    %75 = vmatprep.subr.mxu0 0.0
    %76 = vmatpush1.msra.mxu0 %v39
    %77 = vmatprep.subr.mxu0 0.0
    %78 = vmatpush1.msra.mxu0 %v40
    %79 = vmatprep.subr.mxu0 0.0
    %80 = vmatpush1.msra.mxu0 0.0
    %81 = vmatprep.subr.mxu0 0.0
    %82 = vmatpush1.msra.mxu0 0.0
    %83 = vmatprep.subr.mxu0 0.0
    %84 = vmatpush1.msra.mxu0 0.0
    %85 = vmatprep.subr.mxu0 0.0
    %86 = vmatpush1.msra.mxu0 0.0
    %87 = vmatprep.subr.mxu0 0.0
    %88 = vmatpush1.msra.mxu0 0.0
    %89 = vmatprep.subr.mxu0 0.0
    %90 = vmatpush1.msra.mxu0 0.0
    %91 = vmatprep.subr.mxu0 0.0
    %92 = vmatpush1.msra.mxu0 0.0
    %93 = vmatprep.subr.mxu0 0.0
    %94 = vmatpush1.msra.mxu0 0.0
    %95 = vmatprep.subr.mxu0 0.0
    %96 = vmatpush1.msra.mxu0 0.0
    %97 = vmatprep.subr.mxu0 0.0
    %98 = vmatpush1.msra.mxu0 0.0
    %99 = vmatprep.subr.mxu0 0.0
    %100 = vmatpush1.msra.mxu0 0.0
    %101 = vmatprep.subr.mxu0 0.0
    %102 = vmatpush1.msra.mxu0 0.0
    %103 = vmatprep.subr.mxu0 0.0
    %104 = vmatpush1.msra.mxu0 0.0
    %105 = vmatprep.subr.mxu0 0.0
    %106 = vmatpush1.msra.mxu0 0.0
    %107 = vmatprep.subr.mxu0 0.0
    %108 = vmatpush1.msra.mxu0 0.0
    %109 = vmatprep.subr.mxu0 0.0
    %110 = vmatpush1.msra.mxu0 0.0
    %111 = vmatprep.mubr.f32.mxu0 0.0
    %112 = vmatmul.mubr.f32.gmra.mrb[0].mxu0 %v24
    %v113 = vpop.f32.mrb[0].mxu0
    %v114 = vadd.f32 %v45, %v113
    %v115 = vpop.f32.mrb[0].mxu0
    %116 = vdwg.mxu0
    %v117 = vmax.f32 %v114, 0.0
    %s118 = scalar_lea.vmem %s1, 128
    %v119 = vld [vmem:[%s118] sm:$0xff]
    %v120 = vld [vmem:[%s118 + $0x8] sm:$0xff]
    %v121 = vld [vmem:[%s118 + $0x10] sm:$0xff]
    %v122 = vld [vmem:[%s118 + $0x18] sm:$0xff]
    %v123 = vld [vmem:[%s118 + $0x20] sm:$0xff]
    %v124 = vld [vmem:[%s118 + $0x28] sm:$0xff]
    %v125 = vld [vmem:[%s118 + $0x30] sm:$0xff]
    %v126 = vld [vmem:[%s118 + $0x38] sm:$0xff]
    %v127 = vld [vmem:[%s118 + $0x40] sm:$0xff]
    %v128 = vld [vmem:[%s118 + $0x48] sm:$0xff]
    %v129 = vld [vmem:[%s118 + $0x50] sm:$0xff]
    %v130 = vld [vmem:[%s118 + $0x58] sm:$0xff]
    %v131 = vld [vmem:[%s118 + $0x60] sm:$0xff]
    %v132 = vld [vmem:[%s118 + $0x68] sm:$0xff]
    %v133 = vld [vmem:[%s118 + $0x70] sm:$0xff]
    %v134 = vld [vmem:[%s118 + $0x78] sm:$0xff]
    %v136 = vlaneseq
    %v137 = vshrl.u32 %v136, 7
    %v138 = vsub.s32 0, %v137
    %v139 = vrot.slane %v19, %v138
    %141 = vmatprep.subr.mxu0 0.0
    %142 = vmatpush1.msra.mxu0 %v119
    %143 = vmatprep.subr.mxu0 0.0
    %144 = vmatpush1.msra.mxu0 %v120
    %145 = vmatprep.subr.mxu0 0.0
    %146 = vmatpush1.msra.mxu0 %v121
    %147 = vmatprep.subr.mxu0 0.0
    %148 = vmatpush1.msra.mxu0 %v122
    %149 = vmatprep.subr.mxu0 0.0
    %150 = vmatpush1.msra.mxu0 %v123
    %151 = vmatprep.subr.mxu0 0.0
    %152 = vmatpush1.msra.mxu0 %v124
    %153 = vmatprep.subr.mxu0 0.0
    %154 = vmatpush1.msra.mxu0 %v125
    %155 = vmatprep.subr.mxu0 0.0
    %156 = vmatpush1.msra.mxu0 %v126
    %157 = vmatprep.subr.mxu0 0.0
    %158 = vmatpush1.msra.mxu0 %v127
    %159 = vmatprep.subr.mxu0 0.0
    %160 = vmatpush1.msra.mxu0 %v128
    %161 = vmatprep.subr.mxu0 0.0
    %162 = vmatpush1.msra.mxu0 %v129
    %163 = vmatprep.subr.mxu0 0.0
    %164 = vmatpush1.msra.mxu0 %v130
    %165 = vmatprep.subr.mxu0 0.0
    %166 = vmatpush1.msra.mxu0 %v131
    %167 = vmatprep.subr.mxu0 0.0
    %168 = vmatpush1.msra.mxu0 %v132
    %169 = vmatprep.subr.mxu0 0.0
    %170 = vmatpush1.msra.mxu0 %v133
    %171 = vmatprep.subr.mxu0 0.0
    %172 = vmatpush1.msra.mxu0 %v134
    %173 = vmatprep.subr.mxu0 0.0
    %174 = vmatpush1.msra.mxu0 0.0
    %175 = vmatprep.subr.mxu0 0.0
    %176 = vmatpush1.msra.mxu0 0.0
    %177 = vmatprep.subr.mxu0 0.0
    %178 = vmatpush1.msra.mxu0 0.0
    %179 = vmatprep.subr.mxu0 0.0
    %180 = vmatpush1.msra.mxu0 0.0
    %181 = vmatprep.subr.mxu0 0.0
    %182 = vmatpush1.msra.mxu0 0.0
    %183 = vmatprep.subr.mxu0 0.0
    %184 = vmatpush1.msra.mxu0 0.0
    %185 = vmatprep.subr.mxu0 0.0
    %186 = vmatpush1.msra.mxu0 0.0
    %187 = vmatprep.subr.mxu0 0.0
    %188 = vmatpush1.msra.mxu0 0.0
    %189 = vmatprep.subr.mxu0 0.0
    %190 = vmatpush1.msra.mxu0 0.0
    %191 = vmatprep.subr.mxu0 0.0
    %192 = vmatpush1.msra.mxu0 0.0
    %193 = vmatprep.subr.mxu0 0.0
    %194 = vmatpush1.msra.mxu0 0.0
    %195 = vmatprep.subr.mxu0 0.0
    %196 = vmatpush1.msra.mxu0 0.0
    %197 = vmatprep.subr.mxu0 0.0
    %198 = vmatpush1.msra.mxu0 0.0
    %199 = vmatprep.subr.mxu0 0.0
    %200 = vmatpush1.msra.mxu0 0.0
    %201 = vmatprep.subr.mxu0 0.0
    %202 = vmatpush1.msra.mxu0 0.0
    %203 = vmatprep.subr.mxu0 0.0
    %204 = vmatpush1.msra.mxu0 0.0
    %205 = vmatprep.mubr.f32.mxu0 0.0
    %206 = vmatmul.mubr.f32.gmra.mrb[0].mxu0 %v117
    %v207 = vpop.f32.mrb[0].mxu0
    %v208 = vadd.f32 %v139, %v207
    %v209 = vpop.f32.mrb[0].mxu0
    %210 = vdwg.mxu0
    %v211 = vmax.f32 %v208, 0.0
    %s212 = scalar_lea.vmem %s1, 256
    %v213 = vld [vmem:[%s212] sm:$0xff]
    %v214 = vld [vmem:[%s212 + $0x8] sm:$0xff]
    %v215 = vld [vmem:[%s212 + $0x10] sm:$0xff]
    %v216 = vld [vmem:[%s212 + $0x18] sm:$0xff]
    %v217 = vld [vmem:[%s212 + $0x20] sm:$0xff]
    %v218 = vld [vmem:[%s212 + $0x28] sm:$0xff]
    %v219 = vld [vmem:[%s212 + $0x30] sm:$0xff]
    %v220 = vld [vmem:[%s212 + $0x38] sm:$0xff]
    %v221 = vld [vmem:[%s212 + $0x40] sm:$0xff]
    %v222 = vld [vmem:[%s212 + $0x48] sm:$0xff]
    %v223 = vld [vmem:[%s212 + $0x50] sm:$0xff]
    %v224 = vld [vmem:[%s212 + $0x58] sm:$0xff]
    %v225 = vld [vmem:[%s212 + $0x60] sm:$0xff]
    %v226 = vld [vmem:[%s212 + $0x68] sm:$0xff]
    %v227 = vld [vmem:[%s212 + $0x70] sm:$0xff]
    %v228 = vld [vmem:[%s212 + $0x78] sm:$0xff]
    %v230 = vlaneseq
    %v231 = vshrl.u32 %v230, 7
    %v232 = vsub.s32 0, %v231
    %v233 = vrot.slane %v20, %v232
    %235 = vmatprep.subr.mxu0 0.0
    %236 = vmatpush1.msra.mxu0 %v213
    %237 = vmatprep.subr.mxu0 0.0
    %238 = vmatpush1.msra.mxu0 %v214
    %239 = vmatprep.subr.mxu0 0.0
    %240 = vmatpush1.msra.mxu0 %v215
    %241 = vmatprep.subr.mxu0 0.0
    %242 = vmatpush1.msra.mxu0 %v216
    %243 = vmatprep.subr.mxu0 0.0
    %244 = vmatpush1.msra.mxu0 %v217
    %245 = vmatprep.subr.mxu0 0.0
    %246 = vmatpush1.msra.mxu0 %v218
    %247 = vmatprep.subr.mxu0 0.0
    %248 = vmatpush1.msra.mxu0 %v219
    %249 = vmatprep.subr.mxu0 0.0
    %250 = vmatpush1.msra.mxu0 %v220
    %251 = vmatprep.subr.mxu0 0.0
    %252 = vmatpush1.msra.mxu0 %v221
    %253 = vmatprep.subr.mxu0 0.0
    %254 = vmatpush1.msra.mxu0 %v222
    %255 = vmatprep.subr.mxu0 0.0
    %256 = vmatpush1.msra.mxu0 %v223
    %257 = vmatprep.subr.mxu0 0.0
    %258 = vmatpush1.msra.mxu0 %v224
    %259 = vmatprep.subr.mxu0 0.0
    %260 = vmatpush1.msra.mxu0 %v225
    %261 = vmatprep.subr.mxu0 0.0
    %262 = vmatpush1.msra.mxu0 %v226
    %263 = vmatprep.subr.mxu0 0.0
    %264 = vmatpush1.msra.mxu0 %v227
    %265 = vmatprep.subr.mxu0 0.0
    %266 = vmatpush1.msra.mxu0 %v228
    %267 = vmatprep.subr.mxu0 0.0
    %268 = vmatpush1.msra.mxu0 0.0
    %269 = vmatprep.subr.mxu0 0.0
    %270 = vmatpush1.msra.mxu0 0.0
    %271 = vmatprep.subr.mxu0 0.0
    %272 = vmatpush1.msra.mxu0 0.0
    %273 = vmatprep.subr.mxu0 0.0
    %274 = vmatpush1.msra.mxu0 0.0
    %275 = vmatprep.subr.mxu0 0.0
    %276 = vmatpush1.msra.mxu0 0.0
    %277 = vmatprep.subr.mxu0 0.0
    %278 = vmatpush1.msra.mxu0 0.0
    %279 = vmatprep.subr.mxu0 0.0
    %280 = vmatpush1.msra.mxu0 0.0
    %281 = vmatprep.subr.mxu0 0.0
    %282 = vmatpush1.msra.mxu0 0.0
    %283 = vmatprep.subr.mxu0 0.0
    %284 = vmatpush1.msra.mxu0 0.0
    %285 = vmatprep.subr.mxu0 0.0
    %286 = vmatpush1.msra.mxu0 0.0
    %287 = vmatprep.subr.mxu0 0.0
    %288 = vmatpush1.msra.mxu0 0.0
    %289 = vmatprep.subr.mxu0 0.0
    %290 = vmatpush1.msra.mxu0 0.0
    %291 = vmatprep.subr.mxu0 0.0
    %292 = vmatpush1.msra.mxu0 0.0
    %293 = vmatprep.subr.mxu0 0.0
    %294 = vmatpush1.msra.mxu0 0.0
    %295 = vmatprep.subr.mxu0 0.0
    %296 = vmatpush1.msra.mxu0 0.0
    %297 = vmatprep.subr.mxu0 0.0
    %298 = vmatpush1.msra.mxu0 0.0
    %299 = vmatprep.mubr.f32.mxu0 0.0
    %300 = vmatmul.mubr.f32.gmra.mrb[0].mxu0 %v211
    %v301 = vpop.f32.mrb[0].mxu0
    %v302 = vadd.f32 %v233, %v301
    %v303 = vpop.f32.mrb[0].mxu0
    %304 = vdwg.mxu0
    %v305 = vtanh.pop %v302
    %306 = vst [vmem:[#allocation4] sm:$0xff] %v305
    %s307 = scalar_lea.vmem %s1, 384
    %v308 = vld [vmem:[%s307] sm:$0xff]
    %v309 = vld [vmem:[%s307 + $0x8] sm:$0xff]
    %v310 = vld [vmem:[%s307 + $0x10] sm:$0xff]
    %v311 = vld [vmem:[%s307 + $0x18] sm:$0xff]
    %v312 = vld [vmem:[%s307 + $0x20] sm:$0xff]
    %v313 = vld [vmem:[%s307 + $0x28] sm:$0xff]
    %v314 = vld [vmem:[%s307 + $0x30] sm:$0xff]
    %v315 = vld [vmem:[%s307 + $0x38] sm:$0xff]
    %v316 = vld [vmem:[%s307 + $0x40] sm:$0xff]
    %v317 = vld [vmem:[%s307 + $0x48] sm:$0xff]
    %v318 = vld [vmem:[%s307 + $0x50] sm:$0xff]
    %v319 = vld [vmem:[%s307 + $0x58] sm:$0xff]
    %v320 = vld [vmem:[%s307 + $0x60] sm:$0xff]
    %v321 = vld [vmem:[%s307 + $0x68] sm:$0xff]
    %v322 = vld [vmem:[%s307 + $0x70] sm:$0xff]
    %v323 = vld [vmem:[%s307 + $0x78] sm:$0xff]
    %v325 = vlaneseq
    %v326 = vshrl.u32 %v325, 7
    %v327 = vsub.s32 0, %v326
    %v328 = vrot.slane %v21, %v327
    %330 = vmatprep.subr.mxu0 0.0
    %331 = vmatpush1.msra.mxu0 %v308
    %332 = vmatprep.subr.mxu0 0.0
    %333 = vmatpush1.msra.mxu0 %v309
    %334 = vmatprep.subr.mxu0 0.0
    %335 = vmatpush1.msra.mxu0 %v310
    %336 = vmatprep.subr.mxu0 0.0
    %337 = vmatpush1.msra.mxu0 %v311
    %338 = vmatprep.subr.mxu0 0.0
    %339 = vmatpush1.msra.mxu0 %v312
    %340 = vmatprep.subr.mxu0 0.0
    %341 = vmatpush1.msra.mxu0 %v313
    %342 = vmatprep.subr.mxu0 0.0
    %343 = vmatpush1.msra.mxu0 %v314
    %344 = vmatprep.subr.mxu0 0.0
    %345 = vmatpush1.msra.mxu0 %v315
    %346 = vmatprep.subr.mxu0 0.0
    %347 = vmatpush1.msra.mxu0 %v316
    %348 = vmatprep.subr.mxu0 0.0
    %349 = vmatpush1.msra.mxu0 %v317
    %350 = vmatprep.subr.mxu0 0.0
    %351 = vmatpush1.msra.mxu0 %v318
    %352 = vmatprep.subr.mxu0 0.0
    %353 = vmatpush1.msra.mxu0 %v319
    %354 = vmatprep.subr.mxu0 0.0
    %355 = vmatpush1.msra.mxu0 %v320
    %356 = vmatprep.subr.mxu0 0.0
    %357 = vmatpush1.msra.mxu0 %v321
    %358 = vmatprep.subr.mxu0 0.0
    %359 = vmatpush1.msra.mxu0 %v322
    %360 = vmatprep.subr.mxu0 0.0
    %361 = vmatpush1.msra.mxu0 %v323
    %362 = vmatprep.subr.mxu0 0.0
    %363 = vmatpush1.msra.mxu0 0.0
    %364 = vmatprep.subr.mxu0 0.0
    %365 = vmatpush1.msra.mxu0 0.0
    %366 = vmatprep.subr.mxu0 0.0
    %367 = vmatpush1.msra.mxu0 0.0
    %368 = vmatprep.subr.mxu0 0.0
    %369 = vmatpush1.msra.mxu0 0.0
    %370 = vmatprep.subr.mxu0 0.0
    %371 = vmatpush1.msra.mxu0 0.0
    %372 = vmatprep.subr.mxu0 0.0
    %373 = vmatpush1.msra.mxu0 0.0
    %374 = vmatprep.subr.mxu0 0.0
    %375 = vmatpush1.msra.mxu0 0.0
    %376 = vmatprep.subr.mxu0 0.0
    %377 = vmatpush1.msra.mxu0 0.0
    %378 = vmatprep.subr.mxu0 0.0
    %379 = vmatpush1.msra.mxu0 0.0
    %380 = vmatprep.subr.mxu0 0.0
    %381 = vmatpush1.msra.mxu0 0.0
    %382 = vmatprep.subr.mxu0 0.0
    %383 = vmatpush1.msra.mxu0 0.0
    %384 = vmatprep.subr.mxu0 0.0
    %385 = vmatpush1.msra.mxu0 0.0
    %386 = vmatprep.subr.mxu0 0.0
    %387 = vmatpush1.msra.mxu0 0.0
    %388 = vmatprep.subr.mxu0 0.0
    %389 = vmatpush1.msra.mxu0 0.0
    %390 = vmatprep.subr.mxu0 0.0
    %391 = vmatpush1.msra.mxu0 0.0
    %392 = vmatprep.subr.mxu0 0.0
    %393 = vmatpush1.msra.mxu0 0.0
    %394 = vmatprep.mubr.f32.mxu0 0.0
    %395 = vmatmul.mubr.f32.gmra.mrb[0].mxu0 %v305
    %v396 = vpop.f32.mrb[0].mxu0
    %v397 = vadd.f32 %v328, %v396
    %v398 = vpop.f32.mrb[0].mxu0
    %399 = vdwg.mxu0
    %v400 = vmax.f32 %v397, 0.0
    %s401 = scalar_lea.vmem %s1, 512
    %v402 = vld [vmem:[%s401] sm:$0xff]
    %v403 = vld [vmem:[%s401 + $0x8] sm:$0xff]
    %v404 = vld [vmem:[%s401 + $0x10] sm:$0xff]
    %v405 = vld [vmem:[%s401 + $0x18] sm:$0xff]
    %v406 = vld [vmem:[%s401 + $0x20] sm:$0xff]
    %v407 = vld [vmem:[%s401 + $0x28] sm:$0xff]
    %v408 = vld [vmem:[%s401 + $0x30] sm:$0xff]
    %v409 = vld [vmem:[%s401 + $0x38] sm:$0xff]
    %v410 = vld [vmem:[%s401 + $0x40] sm:$0xff]
    %v411 = vld [vmem:[%s401 + $0x48] sm:$0xff]
    %v412 = vld [vmem:[%s401 + $0x50] sm:$0xff]
    %v413 = vld [vmem:[%s401 + $0x58] sm:$0xff]
    %v414 = vld [vmem:[%s401 + $0x60] sm:$0xff]
    %v415 = vld [vmem:[%s401 + $0x68] sm:$0xff]
    %v416 = vld [vmem:[%s401 + $0x70] sm:$0xff]
    %v417 = vld [vmem:[%s401 + $0x78] sm:$0xff]
    %v419 = vlaneseq
    %v420 = vshrl.u32 %v419, 7
    %v421 = vsub.s32 0, %v420
    %v422 = vrot.slane %v22, %v421
    %424 = vmatprep.subr.mxu0 0.0
    %425 = vmatpush1.msra.mxu0 %v402
    %426 = vmatprep.subr.mxu0 0.0
    %427 = vmatpush1.msra.mxu0 %v403
    %428 = vmatprep.subr.mxu0 0.0
    %429 = vmatpush1.msra.mxu0 %v404
    %430 = vmatprep.subr.mxu0 0.0
    %431 = vmatpush1.msra.mxu0 %v405
    %432 = vmatprep.subr.mxu0 0.0
    %433 = vmatpush1.msra.mxu0 %v406
    %434 = vmatprep.subr.mxu0 0.0
    %435 = vmatpush1.msra.mxu0 %v407
    %436 = vmatprep.subr.mxu0 0.0
    %437 = vmatpush1.msra.mxu0 %v408
    %438 = vmatprep.subr.mxu0 0.0
    %439 = vmatpush1.msra.mxu0 %v409
    %440 = vmatprep.subr.mxu0 0.0
    %441 = vmatpush1.msra.mxu0 %v410
    %442 = vmatprep.subr.mxu0 0.0
    %443 = vmatpush1.msra.mxu0 %v411
    %444 = vmatprep.subr.mxu0 0.0
    %445 = vmatpush1.msra.mxu0 %v412
    %446 = vmatprep.subr.mxu0 0.0
    %447 = vmatpush1.msra.mxu0 %v413
    %448 = vmatprep.subr.mxu0 0.0
    %449 = vmatpush1.msra.mxu0 %v414
    %450 = vmatprep.subr.mxu0 0.0
    %451 = vmatpush1.msra.mxu0 %v415
    %452 = vmatprep.subr.mxu0 0.0
    %453 = vmatpush1.msra.mxu0 %v416
    %454 = vmatprep.subr.mxu0 0.0
    %455 = vmatpush1.msra.mxu0 %v417
    %456 = vmatprep.subr.mxu0 0.0
    %457 = vmatpush1.msra.mxu0 0.0
    %458 = vmatprep.subr.mxu0 0.0
    %459 = vmatpush1.msra.mxu0 0.0
    %460 = vmatprep.subr.mxu0 0.0
    %461 = vmatpush1.msra.mxu0 0.0
    %462 = vmatprep.subr.mxu0 0.0
    %463 = vmatpush1.msra.mxu0 0.0
    %464 = vmatprep.subr.mxu0 0.0
    %465 = vmatpush1.msra.mxu0 0.0
    %466 = vmatprep.subr.mxu0 0.0
    %467 = vmatpush1.msra.mxu0 0.0
    %468 = vmatprep.subr.mxu0 0.0
    %469 = vmatpush1.msra.mxu0 0.0
    %470 = vmatprep.subr.mxu0 0.0
    %471 = vmatpush1.msra.mxu0 0.0
    %472 = vmatprep.subr.mxu0 0.0
    %473 = vmatpush1.msra.mxu0 0.0
    %474 = vmatprep.subr.mxu0 0.0
    %475 = vmatpush1.msra.mxu0 0.0
    %476 = vmatprep.subr.mxu0 0.0
    %477 = vmatpush1.msra.mxu0 0.0
    %478 = vmatprep.subr.mxu0 0.0
    %479 = vmatpush1.msra.mxu0 0.0
    %480 = vmatprep.subr.mxu0 0.0
    %481 = vmatpush1.msra.mxu0 0.0
    %482 = vmatprep.subr.mxu0 0.0
    %483 = vmatpush1.msra.mxu0 0.0
    %484 = vmatprep.subr.mxu0 0.0
    %485 = vmatpush1.msra.mxu0 0.0
    %486 = vmatprep.subr.mxu0 0.0
    %487 = vmatpush1.msra.mxu0 0.0
    %488 = vmatprep.mubr.f32.mxu0 0.0
    %489 = vmatmul.mubr.f32.gmra.mrb[0].mxu0 %v400
    %v490 = vpop.f32.mrb[0].mxu0
    %v491 = vadd.f32 %v422, %v490
    %v492 = vpop.f32.mrb[0].mxu0
    %493 = vdwg.mxu0
    %v494 = vmax.f32 %v491, 0.0
    %s495 = scalar_lea.vmem %s1, 640
    %v496 = vld [vmem:[%s495] sm:$0xff]
    %v497 = vld [vmem:[%s495 + $0x8] sm:$0xff]
    %v498 = vld [vmem:[%s495 + $0x10] sm:$0xff]
    %v499 = vld [vmem:[%s495 + $0x18] sm:$0xff]
    %v500 = vld [vmem:[%s495 + $0x20] sm:$0xff]
    %v501 = vld [vmem:[%s495 + $0x28] sm:$0xff]
    %v502 = vld [vmem:[%s495 + $0x30] sm:$0xff]
    %v503 = vld [vmem:[%s495 + $0x38] sm:$0xff]
    %v504 = vld [vmem:[%s495 + $0x40] sm:$0xff]
    %v505 = vld [vmem:[%s495 + $0x48] sm:$0xff]
    %v506 = vld [vmem:[%s495 + $0x50] sm:$0xff]
    %v507 = vld [vmem:[%s495 + $0x58] sm:$0xff]
    %v508 = vld [vmem:[%s495 + $0x60] sm:$0xff]
    %v509 = vld [vmem:[%s495 + $0x68] sm:$0xff]
    %v510 = vld [vmem:[%s495 + $0x70] sm:$0xff]
    %v511 = vld [vmem:[%s495 + $0x78] sm:$0xff]
    %v513 = vlaneseq
    %v514 = vshrl.u32 %v513, 7
    %v515 = vsub.s32 0, %v514
    %v516 = vrot.slane %v23, %v515
    %518 = vmatprep.subr.mxu0 0.0
    %519 = vmatpush1.msra.mxu0 %v496
    %520 = vmatprep.subr.mxu0 0.0
    %521 = vmatpush1.msra.mxu0 %v497
    %522 = vmatprep.subr.mxu0 0.0
    %523 = vmatpush1.msra.mxu0 %v498
    %524 = vmatprep.subr.mxu0 0.0
    %525 = vmatpush1.msra.mxu0 %v499
    %526 = vmatprep.subr.mxu0 0.0
    %527 = vmatpush1.msra.mxu0 %v500
    %528 = vmatprep.subr.mxu0 0.0
    %529 = vmatpush1.msra.mxu0 %v501
    %530 = vmatprep.subr.mxu0 0.0
    %531 = vmatpush1.msra.mxu0 %v502
    %532 = vmatprep.subr.mxu0 0.0
    %533 = vmatpush1.msra.mxu0 %v503
    %534 = vmatprep.subr.mxu0 0.0
    %535 = vmatpush1.msra.mxu0 %v504
    %536 = vmatprep.subr.mxu0 0.0
    %537 = vmatpush1.msra.mxu0 %v505
    %538 = vmatprep.subr.mxu0 0.0
    %539 = vmatpush1.msra.mxu0 %v506
    %540 = vmatprep.subr.mxu0 0.0
    %541 = vmatpush1.msra.mxu0 %v507
    %542 = vmatprep.subr.mxu0 0.0
    %543 = vmatpush1.msra.mxu0 %v508
    %544 = vmatprep.subr.mxu0 0.0
    %545 = vmatpush1.msra.mxu0 %v509
    %546 = vmatprep.subr.mxu0 0.0
    %547 = vmatpush1.msra.mxu0 %v510
    %548 = vmatprep.subr.mxu0 0.0
    %549 = vmatpush1.msra.mxu0 %v511
    %550 = vmatprep.subr.mxu0 0.0
    %551 = vmatpush1.msra.mxu0 0.0
    %552 = vmatprep.subr.mxu0 0.0
    %553 = vmatpush1.msra.mxu0 0.0
    %554 = vmatprep.subr.mxu0 0.0
    %555 = vmatpush1.msra.mxu0 0.0
    %556 = vmatprep.subr.mxu0 0.0
    %557 = vmatpush1.msra.mxu0 0.0
    %558 = vmatprep.subr.mxu0 0.0
    %559 = vmatpush1.msra.mxu0 0.0
    %560 = vmatprep.subr.mxu0 0.0
    %561 = vmatpush1.msra.mxu0 0.0
    %562 = vmatprep.subr.mxu0 0.0
    %563 = vmatpush1.msra.mxu0 0.0
    %564 = vmatprep.subr.mxu0 0.0
    %565 = vmatpush1.msra.mxu0 0.0
    %566 = vmatprep.subr.mxu0 0.0
    %567 = vmatpush1.msra.mxu0 0.0
    %568 = vmatprep.subr.mxu0 0.0
    %569 = vmatpush1.msra.mxu0 0.0
    %570 = vmatprep.subr.mxu0 0.0
    %571 = vmatpush1.msra.mxu0 0.0
    %572 = vmatprep.subr.mxu0 0.0
    %573 = vmatpush1.msra.mxu0 0.0
    %574 = vmatprep.subr.mxu0 0.0
    %575 = vmatpush1.msra.mxu0 0.0
    %576 = vmatprep.subr.mxu0 0.0
    %577 = vmatpush1.msra.mxu0 0.0
    %578 = vmatprep.subr.mxu0 0.0
    %579 = vmatpush1.msra.mxu0 0.0
    %580 = vmatprep.subr.mxu0 0.0
    %581 = vmatpush1.msra.mxu0 0.0
    %582 = vmatprep.mubr.f32.mxu0 0.0
    %583 = vmatmul.mubr.f32.gmra.mrb[0].mxu0 %v494
    %v584 = vpop.f32.mrb[0].mxu0
    %v585 = vadd.f32 %v516, %v584
    %v586 = vpop.f32.mrb[0].mxu0
    %587 = vdwg.mxu0
    %588 = vst [vmem:[#allocation2] sm:$0xff] %v585
    // Predicated region
    $region14: #{autoencoder_forward.1} parent=1 // pred_check
      _
    $region15: #{autoencoder_forward.1} parent=1 // pred_check_branch
      %590 = sbr.rel (0) target = $region17
    $region16: #{autoencoder_forward.1} parent=1 // pred_region
      %s592 = ssub.s32 128, 128
      %593 = vsyncadd [#allocation3], %s592
      %s595 = sshll.u32 [#allocation2], 4
      %s596 = int_to_ptr.vmem [resolvable:$true] %s595
      %598 = dma.vmem_to_hbm [thread:$0]  %s596, 128, %s3, [#allocation3]
    $region17: #{autoencoder_forward.1} parent=1 // pred_fallthru
      _
    // Predicated region
    $region18: #{autoencoder_forward.1} parent=1 // pred_check
      _
    $region19: #{autoencoder_forward.1} parent=1 // pred_check_branch
      %600 = sbr.rel (0) target = $region21
    $region20: #{autoencoder_forward.1} parent=1 // pred_region
      %s602 = ssub.s32 128, 128
      %603 = vsyncadd [#allocation5], %s602
      %s605 = sshll.u32 [#allocation4], 4
      %s606 = int_to_ptr.vmem [resolvable:$true] %s605
      %608 = dma.vmem_to_hbm [thread:$0]  %s606, 128, %s4, [#allocation5]
    $region21: #{autoencoder_forward.1} parent=1 // pred_fallthru
      _
    // Predicated region
    $region22: #{autoencoder_forward.1} parent=1 // pred_check
      _
    $region23: #{autoencoder_forward.1} parent=1 // pred_check_branch
      %610 = sbr.rel (0) target = $region25
    $region24: #{autoencoder_forward.1} parent=1 // pred_region
      %611 = dma.done [#allocation3], 128
    $region25: #{autoencoder_forward.1} parent=1 // pred_fallthru
      _
    // Predicated region
    $region26: #{autoencoder_forward.1} parent=1 // pred_check
      _
    $region27: #{autoencoder_forward.1} parent=1 // pred_check_branch
      %613 = sbr.rel (0) target = $region29
    $region28: #{autoencoder_forward.1} parent=1 // pred_region
      %614 = dma.done [#allocation5], 128
    $region29: #{autoencoder_forward.1} parent=1 // pred_fallthru
      _
    %615 = vsyncpa [#allocation3], 1
    %616 = vsyncpa [#allocation5], 1

</llo_original>
